<compile_context>
chip_gen: v7x
topology: tpu7x:2x2x1
jax: 0.10.0
libtpu: 0.0.40
codegen_flags: <defaults>
</compile_context>

<pallas_src>
import jax
import jax.numpy as jnp
from jax.experimental import pallas as pl
from jax.experimental.pallas import tpu as pltpu

hidden_sizes = [20, 30, 20]

# ---- static geometry (matches the PyTorch module spec) ---------------------
INPUT_SIZE = 16
FREQ_SIZE = 8
OUTPUT_SIZE = 4
H0, H1 = hidden_sizes[0], hidden_sizes[1]          # 20, 30

def _round_up8(n):
    return ((n + 7) // 8) * 8

IN_ROWS = _round_up8(INPUT_SIZE + FREQ_SIZE + 1)    # 32  ([x | f | 1] padded)
BIAS_LANE = INPUT_SIZE + FREQ_SIZE                  # 24  (constant-1.0 lane)
H_BAND = 128                                        # silu band (h0+h1=50 fits)
SLAB_COLS = 2 * H_BAND                              # 256: [silu pre | lin out]
ROW_W2 = IN_ROWS                                    # 32
SLAB_ROWS = ROW_W2 + H_BAND                         # 160
OUT_PAD = 8                                         # output lanes (4 real)

assert H0 + H1 <= H_BAND and OUTPUT_SIZE <= OUT_PAD

# tile-size policy
TB_CAP = 2048          # max rows per grid step (VMEM footprint ~6 MB, << limit)
MIN_SPLIT = 1024       # below this, a single grid step (step overhead dominates)


def _kbnn_kernel(xf_ref, slab_ref, o_ref):
    xf = xf_ref[...]                                            # [TB, 32]

    w1 = slab_ref[0:IN_ROWS, :]                                 # [32, 256]
    w2 = slab_ref[ROW_W2:ROW_W2 + H_BAND, 0:H_BAND]             # [128, 128]

    # Stage 1: one MXU op -> [silu pre-activations | folded linear contrib].
    # Biases ride in via the constant-1.0 lane of xf (no broadcast adds).
    z = jnp.dot(xf, w1, preferred_element_type=jnp.float32)     # [TB, 256]
    pre = z[:, 0:H_BAND]                                        # lanes 0:50 real
    lin = z[:, H_BAND:SLAB_COLS]                                # lanes 0:4 real

    # SiLU on the whole band: zero-padded lanes stay exactly zero.
    act = pre * jax.nn.sigmoid(pre)

    # Stage 2: apply folded (W_pr@W_out | W_out) and add the linear path.
    res = jnp.dot(act, w2, preferred_element_type=jnp.float32) + lin   # [TB,128]
    o_ref[...] = res[:, 0:OUT_PAD]


def pack_params(params):
    """Fold linear paths and pack everything into one [160, 256] f32 slab.

    Weights are stored pre-transposed as [in, out]; biases as [1, out].
    """
    w_pr_out = params["w_pr"] @ params["w_out"]                  # [h0, out]
    w_xl_po = params["w_xl"] @ w_pr_out                          # [in, out]
    w_fl_o = params["w_fl"] @ params["w_out"]                    # [freq, out]
    const_b = (params["b_xl"] @ params["w_pr"] + params["b_pr"]
               + params["b_fl"]) @ params["w_out"] + params["b_out"]   # [1, out]

    slab = jnp.zeros((SLAB_ROWS, SLAB_COLS), jnp.float32)
    # --- stage 1, x rows (0:16) ---
    slab = slab.at[0:INPUT_SIZE, 0:H0].set(params["w_xn"])
    slab = slab.at[0:INPUT_SIZE, H_BAND:H_BAND + OUTPUT_SIZE].set(w_xl_po)
    # --- stage 1, f rows (16:24) ---
    fr = INPUT_SIZE
    slab = slab.at[fr:fr + FREQ_SIZE, H0:H0 + H1].set(params["w_fn"])
    slab = slab.at[fr:fr + FREQ_SIZE, H_BAND:H_BAND + OUTPUT_SIZE].set(w_fl_o)
    # --- stage 1, bias row (row 24, driven by the constant-1.0 input lane) ---
    slab = slab.at[BIAS_LANE, 0:H0].set(params["b_xn"][0])
    slab = slab.at[BIAS_LANE, H0:H0 + H1].set(params["b_fn"][0])
    slab = slab.at[BIAS_LANE, H_BAND:H_BAND + OUTPUT_SIZE].set(const_b[0])
    # --- stage 2 weight (rows 32:160, cols 0:128) ---
    slab = slab.at[ROW_W2:ROW_W2 + H0, 0:OUTPUT_SIZE].set(w_pr_out)
    slab = slab.at[ROW_W2 + H0:ROW_W2 + H0 + H1, 0:OUTPUT_SIZE].set(params["w_out"])
    return slab


def _choose_tile(batch):
    """Batch tile (multiple of 8).  Large batches -> even #steps for v7x 2-TC."""
    b8 = _round_up8(batch)
    if b8 <= MIN_SPLIT:
        return b8, b8
    steps = -(-b8 // TB_CAP)          # ceil
    steps = max(2, steps)
    if steps % 2:
        steps += 1                    # even step count so both v7x TCs get work
    tb = _round_up8(-(-b8 // steps))
    return tb, tb * steps


def kbnn_forward(x_parameters, frequency_parameters, slab):
    batch = x_parameters.shape[0]
    tb, b_pad = _choose_tile(batch)

    # [x | f | 1 | 0] packed into 32 lanes (no 128-lane HBM padding pass).
    xf = jnp.zeros((b_pad, IN_ROWS), jnp.float32)
    xf = xf.at[:batch, 0:INPUT_SIZE].set(x_parameters.astype(jnp.float32))
    xf = xf.at[:batch, INPUT_SIZE:INPUT_SIZE + FREQ_SIZE].set(
        frequency_parameters.astype(jnp.float32))
    xf = xf.at[:batch, BIAS_LANE].set(1.0)

    out = pl.pallas_call(
        _kbnn_kernel,
        out_shape=jax.ShapeDtypeStruct((b_pad, OUT_PAD), jnp.float32),
        grid=(b_pad // tb,),
        in_specs=[
            pl.BlockSpec((tb, IN_ROWS), lambda i: (i, 0)),           # activations
            pl.BlockSpec((SLAB_ROWS, SLAB_COLS), lambda i: (0, 0)),  # params
        ],
        out_specs=pl.BlockSpec((tb, OUT_PAD), lambda i: (i, 0)),
        compiler_params=pltpu.CompilerParams(
            dimension_semantics=("parallel",)),
    )(xf, slab)
    return out[:batch, :OUTPUT_SIZE]


def init_kbnn_params(key):
    """PyTorch-style nn.Linear init (uniform +/- 1/sqrt(fan_in)).

    Weights stored pre-transposed as [in, out]; biases as [1, out].
    """
    layer_dims = {
        "xl": (INPUT_SIZE, H0),
        "xn": (INPUT_SIZE, H0),
        "fl": (FREQ_SIZE, H1),
        "fn": (FREQ_SIZE, H1),
        "pr": (H0, H1),
        "out": (H1, OUTPUT_SIZE),
    }
    params = {}
    for name, (fan_in, fan_out) in layer_dims.items():
        key, kw, kb = jax.random.split(key, 3)
        bound = 1.0 / jnp.sqrt(jnp.float32(fan_in))
        params[f"w_{name}"] = jax.random.uniform(
            kw, (fan_in, fan_out), jnp.float32, -bound, bound)
        params[f"b_{name}"] = jax.random.uniform(
            kb, (1, fan_out), jnp.float32, -bound, bound)
    return params


def kbnn_reference(x, f, params):
    """Pure-JAX reference mirroring the PyTorch forward (unfolded)."""
    x_lin = x @ params["w_xl"] + params["b_xl"]
    x_non = jax.nn.silu(x @ params["w_xn"] + params["b_xn"])
    x_comb = x_lin + x_non
    f_lin = f @ params["w_fl"] + params["b_fl"]
    f_non = jax.nn.silu(f @ params["w_fn"] + params["b_fn"])
    f_comb = f_lin + f_non
    x_proj = x_comb @ params["w_pr"] + params["b_pr"]
    combined = x_proj + f_comb
    return combined @ params["w_out"] + params["b_out"]


if __name__ == "__main__":
    batch = 8

    key = jax.random.PRNGKey(0)
    kx, kf, kp, kx2, kf2 = jax.random.split(key, 5)
    x_parameters = jax.random.normal(kx, (batch, INPUT_SIZE), jnp.float32)
    frequency_parameters = jax.random.normal(kf, (batch, FREQ_SIZE), jnp.float32)
    params = init_kbnn_params(kp)
    slab = pack_params(params)

    # Small-shape check (single grid step).
    out = kbnn_forward(x_parameters, frequency_parameters, slab)
    out = jax.block_until_ready(out)
    ref = kbnn_reference(x_parameters, frequency_parameters, params)
    assert out.shape == (batch, OUTPUT_SIZE)
    assert jnp.allclose(out, ref, atol=1e-4, rtol=1e-4), "mismatch vs reference (small)"

    # Larger batch: exercises the multi-step (even #steps) tiled grid path.
    big_batch = 2500      # -> tb=1256, grid=(2,)
    xb = jax.random.normal(kx2, (big_batch, INPUT_SIZE), jnp.float32)
    fb = jax.random.normal(kf2, (big_batch, FREQ_SIZE), jnp.float32)
    out_b = jax.block_until_ready(kbnn_forward(xb, fb, slab))
    ref_b = kbnn_reference(xb, fb, params)
    assert out_b.shape == (big_batch, OUTPUT_SIZE)
    assert jnp.allclose(out_b, ref_b, atol=1e-4, rtol=1e-4), "mismatch vs reference (big)"

    print("KERNEL_OK")
</pallas_src>

<mosaic_0001>
module attributes {stable_mosaic.version = 11 : i64} {
  func.func @_kbnn_kernel(%arg0: i32, %arg1: memref<8x32xf32, #tpu.memory_space<vmem>>, %arg2: memref<160x256xf32, #tpu.memory_space<vmem>>, %arg3: memref<8x8xf32, #tpu.memory_space<vmem>>) attributes {dimension_semantics = [#tpu.dimension_semantics<parallel>], iteration_bounds = array<i64: 1>, scalar_prefetch = 0 : i64, scratch_operands = 0 : i64, tpu.core_type = #tpu.core_type<tc>, window_params = [{transform_indices = @transform_0, window_bounds = array<i64: 8, 32>}, {pipeline_mode = #tpu.pipeline_mode<synchronous>, transform_indices = @transform_1, window_bounds = array<i64: 160, 256>}, {transform_indices = @transform_2, window_bounds = array<i64: 8, 8>}]} {
    %c0 = arith.constant 0 : index
    %c0_0 = arith.constant 0 : index
    %0 = vector.load %arg1[%c0, %c0_0] : memref<8x32xf32, #tpu.memory_space<vmem>>, vector<8x32xf32>
    %c0_1 = arith.constant 0 : index
    %c0_2 = arith.constant 0 : index
    %1 = vector.load %arg2[%c0_1, %c0_2] : memref<160x256xf32, #tpu.memory_space<vmem>>, vector<32x256xf32>
    %c32 = arith.constant 32 : index
    %c0_3 = arith.constant 0 : index
    %2 = vector.load %arg2[%c32, %c0_3] : memref<160x256xf32, #tpu.memory_space<vmem>>, vector<128x128xf32>
    %cst = arith.constant dense<0.000000e+00> : vector<8x256xf32>
    %3 = tpu.matmul %0, %1, %cst {dimension_numbers = #tpu.dot_dimension_numbers<[1], [0], [0], [1], [0, 0, 1, 1], [], []>} : vector<8x32xf32>, vector<32x256xf32>, vector<8x256xf32> -> vector<8x256xf32>
    %4 = vector.extract_strided_slice %3 {offsets = [0, 0], sizes = [8, 128], strides = [1, 1]} : vector<8x256xf32> to vector<8x128xf32>
    %5 = vector.extract_strided_slice %3 {offsets = [0, 128], sizes = [8, 128], strides = [1, 1]} : vector<8x256xf32> to vector<8x128xf32>
    %6 = arith.negf %4 : vector<8x128xf32>
    %7 = math.exp %6 : vector<8x128xf32>
    %cst_4 = arith.constant 1.000000e+00 : f32
    %8 = vector.broadcast %cst_4 : f32 to vector<8x128xf32>
    %9 = arith.addf %8, %7 : vector<8x128xf32>
    %10 = arith.divf %8, %9 : vector<8x128xf32>
    %11 = arith.mulf %4, %10 : vector<8x128xf32>
    %cst_5 = arith.constant dense<0.000000e+00> : vector<8x128xf32>
    %12 = tpu.matmul %11, %2, %cst_5 {dimension_numbers = #tpu.dot_dimension_numbers<[1], [0], [0], [1], [0, 0, 1, 1], [], []>} : vector<8x128xf32>, vector<128x128xf32>, vector<8x128xf32> -> vector<8x128xf32>
    %13 = arith.addf %12, %5 : vector<8x128xf32>
    %14 = vector.extract_strided_slice %13 {offsets = [0, 0], sizes = [8, 8], strides = [1, 1]} : vector<8x128xf32> to vector<8x8xf32>
    %c0_6 = arith.constant 0 : index
    %c0_7 = arith.constant 0 : index
    %15 = vector.load %arg3[%c0_6, %c0_7] : memref<8x8xf32, #tpu.memory_space<vmem>>, vector<8x8xf32>
    tpu.vector_store %arg3[%c0_6, %c0_7], %14 {strides = array<i32>} : memref<8x8xf32, #tpu.memory_space<vmem>>, vector<8x8xf32>,
    return
  }
  func.func @transform_0(%arg0: i32) -> (i32, i32) {
    %c0_i32 = arith.constant 0 : i32
    %c0_i32_0 = arith.constant 0 : i32
    return %arg0, %c0_i32 : i32, i32
  }
  func.func @transform_1(%arg0: i32) -> (i32, i32) {
    %c0_i32 = arith.constant 0 : i32
    %c0_i32_0 = arith.constant 0 : i32
    %c0_i32_1 = arith.constant 0 : i32
    return %c0_i32, %c0_i32_0 : i32, i32
  }
  func.func @transform_2(%arg0: i32) -> (i32, i32) {
    %c0_i32 = arith.constant 0 : i32
    %c0_i32_0 = arith.constant 0 : i32
    return %arg0, %c0_i32 : i32, i32
  }
}

</mosaic_0001>

<llo_original>
// kernel: tpu_custom_call.1
$region0: #{tpu_custom_call.1}
  #allocation0 [shape = 'u32[]', space=smem, size = 0x4, offset = 0x4, fixed_abs, tag = 'smem constant byte address 0x4 - core index']
  #allocation1 [shape = 'u32[144,128]{1,0:T(1,128)}', space=vmem, size = 0x12000, scoped, tag = 'internal scratch']
  %s0 = inlined_call_operand.hbm [shape: f32[8,32], index: 0, kind: input, shape index: {}]
  %s1 = inlined_call_operand.hbm [shape: f32[160,256], index: 1, kind: input, shape index: {}]
  %s2 = inlined_call_operand.hbm [shape: f32[8,8], index: 2, kind: output, shape index: {}]
  %s3 = sld [smem:[#allocation0]]
  $region26: #{tpu_custom_call.1} parent=0
    _
  %s5 = ssub.s32 1, %s3
  %s6 = scalar_select 0, %s5, %s3
  $region1: #{tpu_custom_call.1} parent=0
    #allocation2 [shape = 'u8[4096]{0}', space=vmem, size = 0x1000, scoped, tag = 'input window, operand 0, single buffered']
    #allocation3 [shape = 's32[1]{0}', space=sflag, size = 0x4, scoped, tag = 'scoped memory for tpu_custom_call.1']
    #allocation4 [shape = 's32[1]{0}', space=sflag, size = 0x4, scoped, tag = 'scoped memory for tpu_custom_call.1']
    #allocation5 [shape = 'u8[163840]{0}', space=vmem, size = 0x28000, scoped, tag = 'input window, operand 1, single buffered']
    #allocation6 [shape = 's32[1]{0}', space=sflag, size = 0x4, scoped, tag = 'scoped memory for tpu_custom_call.1']
    #allocation7 [shape = 'u8[4096]{0}', space=vmem, size = 0x1000, scoped, tag = 'output window, operand 0, single buffered']
    %7 = vsyncpa [#allocation3], 0
    %8 = vsyncpa [#allocation6], 0
    %9 = vsyncpa [#allocation4], 0
    // Predicated region
    $region2: #{tpu_custom_call.1} parent=1 // pred_check
      _
    $region3: #{tpu_custom_call.1} parent=1 // pred_check_branch
      %11 = sbr.rel (0) target = $region5
    $region4: #{tpu_custom_call.1} parent=1 // pred_region
      %s13 = ssub.s32 128, 128
      %14 = vsyncadd [#allocation3], %s13
      %s16 = sshll.u32 [#allocation2], 4
      %s17 = int_to_ptr.vmem [resolvable:$true] %s16
      %19 = dma.hbm_to_vmem [thread:$0]  %s0, 128, %s17, [#allocation3]
    $region5: #{tpu_custom_call.1} parent=1 // pred_fallthru
      _
    // Predicated region
    $region6: #{tpu_custom_call.1} parent=1 // pred_check
      _
    $region7: #{tpu_custom_call.1} parent=1 // pred_check_branch
      %21 = sbr.rel (0) target = $region9
    $region8: #{tpu_custom_call.1} parent=1 // pred_region
      %s23 = ssub.s32 5120, 5120
      %24 = vsyncadd [#allocation6], %s23
      %s25 = sshll.u32 [#allocation5], 4
      %s26 = int_to_ptr.vmem [resolvable:$true] %s25
      %31 = dma.hbm_to_vmem [thread:$0]  %s1, 5120, %s26, [#allocation6], 256, 256, 16
    $region9: #{tpu_custom_call.1} parent=1 // pred_fallthru
      _
    // Predicated region
    $region10: #{tpu_custom_call.1} parent=1 // pred_check
      _
    $region11: #{tpu_custom_call.1} parent=1 // pred_check_branch
      %33 = sbr.rel (0) target = $region13
    $region12: #{tpu_custom_call.1} parent=1 // pred_region
      %34 = dma.done [#allocation3], 128
    $region13: #{tpu_custom_call.1} parent=1 // pred_fallthru
      _
    // Predicated region
    $region14: #{tpu_custom_call.1} parent=1 // pred_check
      _
    $region15: #{tpu_custom_call.1} parent=1 // pred_check_branch
      %36 = sbr.rel (0) target = $region17
    $region16: #{tpu_custom_call.1} parent=1 // pred_region
      %37 = dma.done [#allocation6], 5120
    $region17: #{tpu_custom_call.1} parent=1 // pred_fallthru
      _
    %v38 = vld [vmem:[#allocation2] sm:$0xff]
    %v39 = vld [vmem:[#allocation5] sm:$0xff]
    %v40 = vld [vmem:[#allocation5 + $0x8] sm:$0xff]
    %v41 = vld [vmem:[#allocation5 + $0x10] sm:$0xff]
    %v42 = vld [vmem:[#allocation5 + $0x18] sm:$0xff]
    %v43 = vld [vmem:[#allocation5 + $0x20] sm:$0xff]
    %v44 = vld [vmem:[#allocation5 + $0x28] sm:$0xff]
    %v45 = vld [vmem:[#allocation5 + $0x30] sm:$0xff]
    %v46 = vld [vmem:[#allocation5 + $0x38] sm:$0xff]
    %v47 = vld [vmem:[#allocation5 + $0x40] sm:$0xff]
    %v48 = vld [vmem:[#allocation5 + $0x50] sm:$0xff]
    %v49 = vld [vmem:[#allocation5 + $0x60] sm:$0xff]
    %v50 = vld [vmem:[#allocation5 + $0x70] sm:$0xff]
    %v51 = vld [vmem:[#allocation5 + $0x80] sm:$0xff]
    %v52 = vld [vmem:[#allocation5 + $0x90] sm:$0xff]
    %v53 = vld [vmem:[#allocation5 + $0xa0] sm:$0xff]
    %v54 = vld [vmem:[#allocation5 + $0xb0] sm:$0xff]
    %v55 = vld [vmem:[#allocation5 + $0xc0] sm:$0xff]
    %v56 = vld [vmem:[#allocation5 + $0xd0] sm:$0xff]
    %v57 = vld [vmem:[#allocation5 + $0xe0] sm:$0xff]
    %v58 = vld [vmem:[#allocation5 + $0xf0] sm:$0xff]
    %v59 = vld [vmem:[#allocation5 + $0x100] sm:$0xff]
    %v60 = vld [vmem:[#allocation5 + $0x110] sm:$0xff]
    %v61 = vld [vmem:[#allocation5 + $0x120] sm:$0xff]
    %v62 = vld [vmem:[#allocation5 + $0x130] sm:$0xff]
    %vm63 = vcmask 261120
    %v65 = vsel %vm63, %v38, 0
    %67 = vmatprep.subr.mxu0 %v40
    %68 = vmatpush1.msra.mxu0 %v39
    %69 = vmatprep.subr.mxu0 %v42
    %70 = vmatpush1.msra.mxu0 %v41
    %71 = vmatprep.subr.mxu0 %v44
    %72 = vmatpush1.msra.mxu0 %v43
    %73 = vmatprep.subr.mxu0 %v46
    %74 = vmatpush1.msra.mxu0 %v45
    %75 = vmatprep.subr.mxu0 0.0
    %76 = vmatpush1.msra.mxu0 0.0
    %77 = vmatprep.subr.mxu0 0.0
    %78 = vmatpush1.msra.mxu0 0.0
    %79 = vmatprep.subr.mxu0 0.0
    %80 = vmatpush1.msra.mxu0 0.0
    %81 = vmatprep.subr.mxu0 0.0
    %82 = vmatpush1.msra.mxu0 0.0
    %83 = vmatprep.subr.mxu0 0.0
    %84 = vmatpush1.msra.mxu0 0.0
    %85 = vmatprep.subr.mxu0 0.0
    %86 = vmatpush1.msra.mxu0 0.0
    %87 = vmatprep.subr.mxu0 0.0
    %88 = vmatpush1.msra.mxu0 0.0
    %89 = vmatprep.subr.mxu0 0.0
    %90 = vmatpush1.msra.mxu0 0.0
    %91 = vmatprep.subr.mxu0 0.0
    %92 = vmatpush1.msra.mxu0 0.0
    %93 = vmatprep.subr.mxu0 0.0
    %94 = vmatpush1.msra.mxu0 0.0
    %95 = vmatprep.subr.mxu0 0.0
    %96 = vmatpush1.msra.mxu0 0.0
    %97 = vmatprep.subr.mxu0 0.0
    %98 = vmatpush1.msra.mxu0 0.0
    %99 = vmatprep.subr.mxu0 0.0
    %100 = vmatpush1.msra.mxu0 0.0
    %101 = vmatprep.subr.mxu0 0.0
    %102 = vmatpush1.msra.mxu0 0.0
    %103 = vmatprep.subr.mxu0 0.0
    %104 = vmatpush1.msra.mxu0 0.0
    %105 = vmatprep.subr.mxu0 0.0
    %106 = vmatpush1.msra.mxu0 0.0
    %107 = vmatprep.subr.mxu0 0.0
    %108 = vmatpush1.msra.mxu0 0.0
    %109 = vmatprep.subr.mxu0 0.0
    %110 = vmatpush1.msra.mxu0 0.0
    %111 = vmatprep.subr.mxu0 0.0
    %112 = vmatpush1.msra.mxu0 0.0
    %113 = vmatprep.subr.mxu0 0.0
    %114 = vmatpush1.msra.mxu0 0.0
    %115 = vmatprep.subr.mxu0 0.0
    %116 = vmatpush1.msra.mxu0 0.0
    %117 = vmatprep.subr.mxu0 0.0
    %118 = vmatpush1.msra.mxu0 0.0
    %119 = vmatprep.subr.mxu0 0.0
    %120 = vmatpush1.msra.mxu0 0.0
    %121 = vmatprep.subr.mxu0 0.0
    %122 = vmatpush1.msra.mxu0 0.0
    %123 = vmatprep.subr.mxu0 0.0
    %124 = vmatpush1.msra.mxu0 0.0
    %125 = vmatprep.subr.mxu0 0.0
    %126 = vmatpush1.msra.mxu0 0.0
    %127 = vmatprep.subr.mxu0 0.0
    %128 = vmatpush1.msra.mxu0 0.0
    %129 = vmatprep.subr.mxu0 0.0
    %130 = vmatpush1.msra.mxu0 0.0
    %131 = vmatprep.mubr.f32.mxu0 0.0
    %132 = vmatmul.mubr.f32.gmra.mrb[0].mxu0 %v65
    %v133 = vpop.f32.mrb[0].mxu0
    %v134 = vadd.f32 0.0, %v133
    %v135 = vpop.f32.mrb[0].mxu0
    %v136 = vadd.f32 0.0, %v135
    %137 = vdwg.mxu0
    %v138 = vxor.u32 %v134, 2147483648
    %v139 = vmul.f32 %v138, 1.442695
    %v140 = vpow.pop %v139
    %v141 = vadd.f32 %v140, 1.0
    %v142 = vrcp.pop %v141
    %v143 = vmul.f32 1.0, %v142
    %v144 = vmul.f32 %v134, %v143
    %145 = vmatprep.subr.mxu0 0.0
    %146 = vmatpush1.msra.mxu0 %v47
    %147 = vmatprep.subr.mxu0 0.0
    %148 = vmatpush1.msra.mxu0 %v48
    %149 = vmatprep.subr.mxu0 0.0
    %150 = vmatpush1.msra.mxu0 %v49
    %151 = vmatprep.subr.mxu0 0.0
    %152 = vmatpush1.msra.mxu0 %v50
    %153 = vmatprep.subr.mxu0 0.0
    %154 = vmatpush1.msra.mxu0 %v51
    %155 = vmatprep.subr.mxu0 0.0
    %156 = vmatpush1.msra.mxu0 %v52
    %157 = vmatprep.subr.mxu0 0.0
    %158 = vmatpush1.msra.mxu0 %v53
    %159 = vmatprep.subr.mxu0 0.0
    %160 = vmatpush1.msra.mxu0 %v54
    %161 = vmatprep.subr.mxu0 0.0
    %162 = vmatpush1.msra.mxu0 %v55
    %163 = vmatprep.subr.mxu0 0.0
    %164 = vmatpush1.msra.mxu0 %v56
    %165 = vmatprep.subr.mxu0 0.0
    %166 = vmatpush1.msra.mxu0 %v57
    %167 = vmatprep.subr.mxu0 0.0
    %168 = vmatpush1.msra.mxu0 %v58
    %169 = vmatprep.subr.mxu0 0.0
    %170 = vmatpush1.msra.mxu0 %v59
    %171 = vmatprep.subr.mxu0 0.0
    %172 = vmatpush1.msra.mxu0 %v60
    %173 = vmatprep.subr.mxu0 0.0
    %174 = vmatpush1.msra.mxu0 %v61
    %175 = vmatprep.subr.mxu0 0.0
    %176 = vmatpush1.msra.mxu0 %v62
    %177 = vmatprep.subr.mxu0 0.0
    %178 = vmatpush1.msra.mxu0 0.0
    %179 = vmatprep.subr.mxu0 0.0
    %180 = vmatpush1.msra.mxu0 0.0
    %181 = vmatprep.subr.mxu0 0.0
    %182 = vmatpush1.msra.mxu0 0.0
    %183 = vmatprep.subr.mxu0 0.0
    %184 = vmatpush1.msra.mxu0 0.0
    %185 = vmatprep.subr.mxu0 0.0
    %186 = vmatpush1.msra.mxu0 0.0
    %187 = vmatprep.subr.mxu0 0.0
    %188 = vmatpush1.msra.mxu0 0.0
    %189 = vmatprep.subr.mxu0 0.0
    %190 = vmatpush1.msra.mxu0 0.0
    %191 = vmatprep.subr.mxu0 0.0
    %192 = vmatpush1.msra.mxu0 0.0
    %193 = vmatprep.subr.mxu0 0.0
    %194 = vmatpush1.msra.mxu0 0.0
    %195 = vmatprep.subr.mxu0 0.0
    %196 = vmatpush1.msra.mxu0 0.0
    %197 = vmatprep.subr.mxu0 0.0
    %198 = vmatpush1.msra.mxu0 0.0
    %199 = vmatprep.subr.mxu0 0.0
    %200 = vmatpush1.msra.mxu0 0.0
    %201 = vmatprep.subr.mxu0 0.0
    %202 = vmatpush1.msra.mxu0 0.0
    %203 = vmatprep.subr.mxu0 0.0
    %204 = vmatpush1.msra.mxu0 0.0
    %205 = vmatprep.subr.mxu0 0.0
    %206 = vmatpush1.msra.mxu0 0.0
    %207 = vmatprep.subr.mxu0 0.0
    %208 = vmatpush1.msra.mxu0 0.0
    %209 = vmatprep.mubr.f32.mxu0 0.0
    %210 = vmatmul.mubr.f32.gmra.mrb[0].mxu0 %v144
    %v211 = vpop.f32.mrb[0].mxu0
    %v212 = vadd.f32 %v136, %v211
    %v213 = vpop.f32.mrb[0].mxu0
    %214 = vdwg.mxu0
    %vm215 = vcmask 64512
    %216 = vst.msk [vmem:[#allocation7] sm:$0xff] %vm215, %v212
    // Predicated region
    $region18: #{tpu_custom_call.1} parent=1 // pred_check
      _
    $region19: #{tpu_custom_call.1} parent=1 // pred_check_branch
      %218 = sbr.rel (0) target = $region21
    $region20: #{tpu_custom_call.1} parent=1 // pred_region
      %s220 = ssub.s32 128, 128
      %221 = vsyncadd [#allocation4], %s220
      %s223 = sshll.u32 [#allocation7], 4
      %s224 = int_to_ptr.vmem [resolvable:$true] %s223
      %226 = dma.vmem_to_hbm [thread:$0]  %s224, 128, %s2, [#allocation4]
    $region21: #{tpu_custom_call.1} parent=1 // pred_fallthru
      _
    // Predicated region
    $region22: #{tpu_custom_call.1} parent=1 // pred_check
      _
    $region23: #{tpu_custom_call.1} parent=1 // pred_check_branch
      %228 = sbr.rel (0) target = $region25
    $region24: #{tpu_custom_call.1} parent=1 // pred_region
      %229 = dma.done [#allocation4], 128
    $region25: #{tpu_custom_call.1} parent=1 // pred_fallthru
      _
    %230 = vsyncpa [#allocation3], 1
    %231 = vsyncpa [#allocation6], 1
    %232 = vsyncpa [#allocation4], 1

</llo_original>
